<compile_context>
chip_gen: v7x
topology: tpu7x:2x2x1
jax: 0.10.0
libtpu: 0.0.40
codegen_flags: <defaults>
</compile_context>

<pallas_src>
import functools

import jax
import jax.numpy as jnp
from jax import lax
from jax.experimental import pallas as pl
from jax.experimental.pallas import tpu as pltpu


# --------------------------------------------------------------------------
# Kernel
# --------------------------------------------------------------------------
def _sine_layer_kernel(x_ref, w_ref, b_ref, o_ref, *scratch,
                       omega_0, mode, n_k):
    x = x_ref[...]
    w = w_ref[...]

    if mode == "bf16x3":
        # 3-pass bf16x3: near-f32 accuracy at half the MXU passes of HIGHEST.
        xh = x.astype(jnp.bfloat16)
        xl = (x - xh.astype(jnp.float32)).astype(jnp.bfloat16)
        wh = w.astype(jnp.bfloat16)
        wl = (w - wh.astype(jnp.float32)).astype(jnp.bfloat16)
        part = jnp.dot(xh, wh, preferred_element_type=jnp.float32)
        part = part + jnp.dot(xh, wl, preferred_element_type=jnp.float32)
        part = part + jnp.dot(xl, wh, preferred_element_type=jnp.float32)
    elif mode == "highest":
        # Opt-in exact-f32 path (6 MXU passes).
        part = jnp.dot(x, w, preferred_element_type=jnp.float32,
                       precision=lax.Precision.HIGHEST)
    else:  # "bf16": operands cast in the wrapper; single MXU pass, f32 acc.
        part = jnp.dot(x, w, preferred_element_type=jnp.float32)

    def epilogue(y):
        # Bias add + (optional) omega scale + sin, all f32 on the VPU/EUP.
        y = y + b_ref[...].astype(jnp.float32)
        if omega_0 != 1.0:          # static: folded-omega path skips the mul
            y = omega_0 * y
        o_ref[...] = jnp.sin(y).astype(o_ref.dtype)

    if n_k == 1:
        epilogue(part)
    else:
        acc_ref = scratch[0]
        k = pl.program_id(2)

        @pl.when(k == 0)
        def _():
            acc_ref[...] = jnp.zeros_like(acc_ref)

        acc_ref[...] += part

        @pl.when(k == n_k - 1)
        def _():
            epilogue(acc_ref[...])


# --------------------------------------------------------------------------
# Tiling / VMEM budgeting
# --------------------------------------------------------------------------
def _vmem_budget_and_limit():
    """Generation-aware VMEM budgeting (v5e/v6e: 128 MiB, v7x: 64 MiB)."""
    try:
        info = pltpu.get_tpu_info()
        cap = int(getattr(info, "vmem_capacity_bytes", 0)) or (64 << 20)
    except Exception:
        cap = 64 << 20
    budget = int(cap * 0.55)   # what the tiles themselves may use
    limit = int(cap * 0.75)    # scoped-VMEM request to the compiler
    return budget, limit


def _choose_tiles(M, K, N, *, op_item, out_item, mode, budget):
    """Pick (TM, TN, TK) honoring (8,128) blocks and the VMEM budget.

    Preference order: keep TN = N (weight resident across all M tiles),
    shrink along K (accumulator grid axis) before shrinking TM, keep a
    256-row TM floor for full MXU occupancy.
    """
    def footprint(tm, tn, tk):
        x_b = 2 * tm * tk * op_item          # double-buffered x tile
        w_b = 2 * tk * tn * op_item          # double-buffered weight tile
        b_b = 2 * 8 * tn * 4                 # bias row (sublane-padded)
        o_b = 2 * tm * tn * out_item         # double-buffered output tile
        acc = tm * tn * 4 if tk < K else 0   # f32 accumulator scratch
        temps = 2 * tm * tn * 4              # f32 dot result + sin temporary
        if mode == "bf16x3":
            temps += 2 * (tm * tk + tk * tn) * 2   # bf16 hi/lo copies
        return x_b + w_b + b_b + o_b + acc + temps

    # TN: full N first (weight residency), then 256-aligned lane-dense tiles.
    tn_cands = [N]
    for c in (1024, 512, 256, 128):
        if c < N and c not in tn_cands:
            tn_cands.append(c)

    # TK: full K first; only exact divisors so the ragged K tail never leaks
    # garbage into the accumulator.
    tk_cands = [K]
    for c in (2048, 1024, 512):
        if c < K and K % c == 0:
            tk_cands.append(c)

    # TM: large -> small with a 256 floor; small M is taken as one full block.
    tm_cands = [t for t in (1024, 512, 256) if t <= M]
    if not tm_cands:
        tm_cands = [M]

    for tn in tn_cands:
        for tm in tm_cands:
            for tk in tk_cands:
                if footprint(tm, tn, tk) <= budget:
                    return tm, tn, tk
    return tm_cands[-1], tn_cands[-1], tk_cands[-1]


# --------------------------------------------------------------------------
# Wrappers
# --------------------------------------------------------------------------
def sine_layer_wt(x, w_t, bias, omega_0=30.0, precision="bf16x3"):
    """SIREN layer with a pre-transposed weight (hot-path entry point).

    x: (..., K); w_t: (K, N) == weight.T (store params this way to avoid a
    per-call transpose); bias: (N,).
    precision: "bf16x3" (default, 3-pass, ~f32 accuracy), "highest"
    (6-pass exact f32), or "bf16" (1-pass bf16 operands, f32 accumulate).
    Returns sin(omega_0 * (x @ w_t + bias)).  Pass omega_0=1.0 with
    prepare_sine_layer_params() output to drop the in-kernel omega multiply.
    """
    if precision not in ("bf16x3", "highest", "bf16"):
        raise ValueError(f"unknown precision mode: {precision!r}")

    orig_shape = x.shape
    K = orig_shape[-1]
    Kw, N = w_t.shape
    assert Kw == K, (Kw, K)
    out_dtype = x.dtype

    x2d = x.reshape(-1, K)
    M = x2d.shape[0]

    # Lane-dense outputs: pad N up to a multiple of 128 (zero columns are
    # computed and sliced away; a no-op for typical SIREN widths).
    N_pad = ((N + 127) // 128) * 128
    if N_pad != N:
        w_t = jnp.pad(w_t, ((0, 0), (0, N_pad - N)))
        bias = jnp.pad(bias, (0, N_pad - N))
    b2d = bias.reshape(1, N_pad).astype(jnp.float32)

    if precision == "bf16":
        x2d = x2d.astype(jnp.bfloat16)
        w_t = w_t.astype(jnp.bfloat16)
        op_item = 2
    else:
        x2d = x2d.astype(jnp.float32)
        w_t = w_t.astype(jnp.float32)
        op_item = 4
    out_item = jnp.dtype(out_dtype).itemsize

    budget, vmem_limit = _vmem_budget_and_limit()
    TM, TN, TK = _choose_tiles(M, K, N_pad, op_item=op_item,
                               out_item=out_item, mode=precision,
                               budget=budget)
    n_k = int(pl.cdiv(K, TK))
    grid = (pl.cdiv(M, TM), pl.cdiv(N_pad, TN), n_k)

    scratch = [pltpu.VMEM((TM, TN), jnp.float32)] if n_k > 1 else []

    kernel = functools.partial(_sine_layer_kernel,
                               omega_0=float(omega_0),
                               mode=precision, n_k=n_k)

    out = pl.pallas_call(
        kernel,
        out_shape=jax.ShapeDtypeStruct((M, N_pad), out_dtype),
        grid_spec=pltpu.PrefetchScalarGridSpec(
            num_scalar_prefetch=0,
            grid=grid,
            in_specs=[
                pl.BlockSpec((TM, TK), lambda i, j, k: (i, k)),  # x tile
                pl.BlockSpec((TK, TN), lambda i, j, k: (k, j)),  # weight tile
                pl.BlockSpec((1, TN), lambda i, j, k: (0, j)),   # bias row
            ],
            out_specs=pl.BlockSpec((TM, TN), lambda i, j, k: (i, j)),
            scratch_shapes=scratch,
        ),
        compiler_params=pltpu.CompilerParams(
            # M/N tiles are independent -> shard across v7x's 2 TensorCores;
            # K is a reduction axis (accumulator) -> arbitrary.
            dimension_semantics=("parallel", "parallel", "arbitrary"),
            vmem_limit_bytes=vmem_limit,
        ),
    )(x2d, w_t, b2d)

    if N_pad != N:
        out = out[:, :N]
    return out.reshape(*orig_shape[:-1], N)


def sine_layer(x, weight, bias, omega_0=30.0, precision="bf16x3"):
    """PyTorch-layout drop-in: weight is (out_features, in_features).

    NOTE: weight.T is a full XLA transpose copy every call; hot loops should
    store the transposed (and optionally omega-folded) weight once via
    prepare_sine_layer_params() and call sine_layer_wt() directly.
    """
    return sine_layer_wt(x, weight.T, bias, omega_0=omega_0,
                         precision=precision)


def prepare_sine_layer_params(weight, bias, omega_0=30.0):
    """One-time parameter prep: transpose to (K, N) and fold omega_0 in.

    sin(omega*(x@W.T + b)) == sin(x @ (omega*W.T) + omega*b), so the per-call
    transpose and the per-element omega multiply both disappear; call
    sine_layer_wt(x, w_t, b, omega_0=1.0, ...) with the result.
    """
    w_t = (omega_0 * weight.T).astype(weight.dtype)
    b = (omega_0 * bias).astype(bias.dtype)
    return w_t, b


def init_sine_layer_params(key, in_features, out_features, is_first=False,
                           omega_0=30.0):
    """Deterministic init matching SineLayer.init_weights + default bias init."""
    kw, kb = jax.random.split(key)
    if is_first:
        w_bound = 1.0 / in_features
    else:
        w_bound = jnp.sqrt(6.0 / in_features) / omega_0
    weight = jax.random.uniform(
        kw, (out_features, in_features), jnp.float32,
        minval=-w_bound, maxval=w_bound)
    b_bound = 1.0 / jnp.sqrt(in_features)
    bias = jax.random.uniform(
        kb, (out_features,), jnp.float32, minval=-b_bound, maxval=b_bound)
    return weight, bias


if __name__ == "__main__":
    key = jax.random.PRNGKey(0)
    k_x, k_p = jax.random.split(key)

    # Small demo shapes consistent with the module: (2, 8, 32) -> (2, 8, 32).
    lead, seq, in_features, out_features = 2, 8, 32, 32
    omega_0 = 30.0

    x = jax.random.normal(k_x, (lead, seq, in_features), jnp.float32)
    weight, bias = init_sine_layer_params(
        k_p, in_features, out_features, is_first=True, omega_0=omega_0)

    # Full-precision pure-JAX reference.
    ref = jnp.sin(omega_0 * (
        jnp.matmul(x, weight.T, precision=lax.Precision.HIGHEST) + bias))

    # 1) Default path: 3-pass bf16x3 matmul (near-f32 accuracy).
    out = jax.block_until_ready(sine_layer(x, weight, bias, omega_0=omega_0))
    assert out.shape == (lead, seq, out_features)
    assert jnp.allclose(out, ref, atol=1e-3, rtol=1e-3), float(
        jnp.max(jnp.abs(out - ref)))

    # 2) Opt-in exact-f32 path (Precision.HIGHEST) — tight tolerance.
    out_hi = jax.block_until_ready(
        sine_layer(x, weight, bias, omega_0=omega_0, precision="highest"))
    assert jnp.allclose(out_hi, ref, atol=1e-5, rtol=1e-5), float(
        jnp.max(jnp.abs(out_hi - ref)))

    # 3) Pre-transposed / omega-folded hot path (no per-call transpose,
    #    no in-kernel omega multiply).
    w_t, b_f = prepare_sine_layer_params(weight, bias, omega_0=omega_0)
    out_folded = jax.block_until_ready(sine_layer_wt(x, w_t, b_f, omega_0=1.0))
    assert jnp.allclose(out_folded, ref, atol=1e-3, rtol=1e-3), float(
        jnp.max(jnp.abs(out_folded - ref)))

    print("KERNEL_OK")
</pallas_src>

<mosaic_0001>
module attributes {stable_mosaic.version = 11 : i64} {
  func.func @_sine_layer_kernel(%arg0: i32, %arg1: i32, %arg2: i32, %arg3: memref<16x32xf32, #tpu.memory_space<vmem>>, %arg4: memref<32x128xf32, #tpu.memory_space<vmem>>, %arg5: memref<1x128xf32, #tpu.memory_space<vmem>>, %arg6: memref<16x128xf32, #tpu.memory_space<vmem>>) attributes {dimension_semantics = [#tpu.dimension_semantics<parallel>, #tpu.dimension_semantics<parallel>, #tpu.dimension_semantics<arbitrary>], iteration_bounds = array<i64: 1, 1, 1>, scalar_prefetch = 0 : i64, scratch_operands = 0 : i64, tpu.core_type = #tpu.core_type<tc>, window_params = [{transform_indices = @transform_0, window_bounds = array<i64: 16, 32>}, {transform_indices = @transform_1, window_bounds = array<i64: 32, 128>}, {transform_indices = @transform_2, window_bounds = array<i64: 1, 128>}, {transform_indices = @transform_3, window_bounds = array<i64: 16, 128>}]} {
    %c0 = arith.constant 0 : index
    %c0_0 = arith.constant 0 : index
    %0 = vector.load %arg3[%c0, %c0_0] : memref<16x32xf32, #tpu.memory_space<vmem>>, vector<16x32xf32>
    %c0_1 = arith.constant 0 : index
    %c0_2 = arith.constant 0 : index
    %1 = vector.load %arg4[%c0_1, %c0_2] : memref<32x128xf32, #tpu.memory_space<vmem>>, vector<32x128xf32>
    %2 = arith.truncf %0 : vector<16x32xf32> to vector<16x32xbf16>
    %3 = arith.extf %2 : vector<16x32xbf16> to vector<16x32xf32>
    %4 = arith.subf %0, %3 : vector<16x32xf32>
    %5 = arith.truncf %4 : vector<16x32xf32> to vector<16x32xbf16>
    %6 = arith.truncf %1 : vector<32x128xf32> to vector<32x128xbf16>
    %7 = arith.extf %6 : vector<32x128xbf16> to vector<32x128xf32>
    %8 = arith.subf %1, %7 : vector<32x128xf32>
    %9 = arith.truncf %8 : vector<32x128xf32> to vector<32x128xbf16>
    %cst = arith.constant dense<0.000000e+00> : vector<16x128xf32>
    %10 = tpu.matmul %2, %6, %cst {dimension_numbers = #tpu.dot_dimension_numbers<[1], [0], [0], [1], [0, 0, 1, 1], [], []>} : vector<16x32xbf16>, vector<32x128xbf16>, vector<16x128xf32> -> vector<16x128xf32>
    %cst_3 = arith.constant dense<0.000000e+00> : vector<16x128xf32>
    %11 = tpu.matmul %2, %9, %cst_3 {dimension_numbers = #tpu.dot_dimension_numbers<[1], [0], [0], [1], [0, 0, 1, 1], [], []>} : vector<16x32xbf16>, vector<32x128xbf16>, vector<16x128xf32> -> vector<16x128xf32>
    %12 = arith.addf %10, %11 : vector<16x128xf32>
    %cst_4 = arith.constant dense<0.000000e+00> : vector<16x128xf32>
    %13 = tpu.matmul %5, %6, %cst_4 {dimension_numbers = #tpu.dot_dimension_numbers<[1], [0], [0], [1], [0, 0, 1, 1], [], []>} : vector<16x32xbf16>, vector<32x128xbf16>, vector<16x128xf32> -> vector<16x128xf32>
    %14 = arith.addf %12, %13 : vector<16x128xf32>
    %c0_5 = arith.constant 0 : index
    %c0_6 = arith.constant 0 : index
    %15 = vector.load %arg5[%c0_5, %c0_6] : memref<1x128xf32, #tpu.memory_space<vmem>>, vector<1x128xf32>
    %16 = vector.broadcast %15 : vector<1x128xf32> to vector<16x128xf32>
    %17 = arith.addf %14, %16 : vector<16x128xf32>
    %cst_7 = arith.constant 3.000000e+01 : f32
    %18 = vector.broadcast %cst_7 : f32 to vector<16x128xf32>
    %19 = arith.mulf %18, %17 : vector<16x128xf32>
    %20 = math.sin %19 : vector<16x128xf32>
    %c0_8 = arith.constant 0 : index
    %c0_9 = arith.constant 0 : index
    %21 = vector.load %arg6[%c0_8, %c0_9] : memref<16x128xf32, #tpu.memory_space<vmem>>, vector<16x128xf32>
    tpu.vector_store %arg6[%c0_8, %c0_9], %20 {strides = array<i32>} : memref<16x128xf32, #tpu.memory_space<vmem>>, vector<16x128xf32>,
    return
  }
  func.func @transform_0(%arg0: i32, %arg1: i32, %arg2: i32) -> (i32, i32) {
    %c0_i32 = arith.constant 0 : i32
    return %arg0, %arg2 : i32, i32
  }
  func.func @transform_1(%arg0: i32, %arg1: i32, %arg2: i32) -> (i32, i32) {
    %c0_i32 = arith.constant 0 : i32
    return %arg2, %arg1 : i32, i32
  }
  func.func @transform_2(%arg0: i32, %arg1: i32, %arg2: i32) -> (i32, i32) {
    %c0_i32 = arith.constant 0 : i32
    %c0_i32_0 = arith.constant 0 : i32
    return %c0_i32, %arg1 : i32, i32
  }
  func.func @transform_3(%arg0: i32, %arg1: i32, %arg2: i32) -> (i32, i32) {
    %c0_i32 = arith.constant 0 : i32
    return %arg0, %arg1 : i32, i32
  }
}

</mosaic_0001>

<llo_original>
// kernel: tpu_custom_call.1
$region0: #{tpu_custom_call.1}
  #allocation0 [shape = 'u32[]', space=smem, size = 0x4, offset = 0x4, fixed_abs, tag = 'smem constant byte address 0x4 - core index']
  #allocation1 [shape = 'u32[144,128]{1,0:T(1,128)}', space=vmem, size = 0x12000, scoped, tag = 'internal scratch']
  %s0 = inlined_call_operand.hbm [shape: f32[16,32], index: 0, kind: input, shape index: {}]
  %s1 = inlined_call_operand.hbm [shape: f32[32,128], index: 1, kind: input, shape index: {}]
  %s2 = inlined_call_operand.vmem [shape: f32[1,128], index: 2, kind: input, shape index: {}]
  %s3 = inlined_call_operand.hbm [shape: f32[16,128], index: 3, kind: output, shape index: {}]
  %s4 = sld [smem:[#allocation0]]
  $region30: #{tpu_custom_call.1} parent=0
    _
  %s6 = ssub.s32 1, %s4
  %s7 = scalar_select 0, %s6, %s4
  $region1: #{tpu_custom_call.1} parent=0
    #allocation2 [shape = 'u8[8192]{0}', space=vmem, size = 0x2000, scoped, tag = 'input window, operand 0, single buffered']
    #allocation3 [shape = 's32[1]{0}', space=sflag, size = 0x4, scoped, tag = 'scoped memory for tpu_custom_call.1']
    #allocation4 [shape = 's32[1]{0}', space=sflag, size = 0x4, scoped, tag = 'scoped memory for tpu_custom_call.1']
    #allocation5 [shape = 'u8[16384]{0}', space=vmem, size = 0x4000, scoped, tag = 'input window, operand 1, single buffered']
    #allocation6 [shape = 's32[1]{0}', space=sflag, size = 0x4, scoped, tag = 'scoped memory for tpu_custom_call.1']
    #allocation7 [shape = 'u8[8192]{0}', space=vmem, size = 0x2000, scoped, tag = 'output window, operand 0, single buffered']
    %8 = vsyncpa [#allocation3], 0
    %9 = vsyncpa [#allocation6], 0
    %10 = vsyncpa [#allocation4], 0
    // Predicated region
    $region2: #{tpu_custom_call.1} parent=1 // pred_check
      _
    $region3: #{tpu_custom_call.1} parent=1 // pred_check_branch
      %12 = sbr.rel (0) target = $region5
    $region4: #{tpu_custom_call.1} parent=1 // pred_region
      %s14 = ssub.s32 256, 256
      %15 = vsyncadd [#allocation3], %s14
      %s16 = sshll.u32 [#allocation2], 4
      %s17 = int_to_ptr.vmem [resolvable:$true] %s16
      %22 = dma.hbm_to_vmem [thread:$0]  %s0, 256, %s17, [#allocation3], 128, 128, 8
    $region5: #{tpu_custom_call.1} parent=1 // pred_fallthru
      _
    // Predicated region
    $region6: #{tpu_custom_call.1} parent=1 // pred_check
      _
    $region7: #{tpu_custom_call.1} parent=1 // pred_check_branch
      %24 = sbr.rel (0) target = $region9
    $region8: #{tpu_custom_call.1} parent=1 // pred_region
      %s26 = ssub.s32 512, 512
      %27 = vsyncadd [#allocation6], %s26
      %s28 = sshll.u32 [#allocation5], 4
      %s29 = int_to_ptr.vmem [resolvable:$true] %s28
      %34 = dma.hbm_to_vmem [thread:$0]  %s1, 512, %s29, [#allocation6], 128, 128, 8
    $region9: #{tpu_custom_call.1} parent=1 // pred_fallthru
      _
    // Predicated region
    $region10: #{tpu_custom_call.1} parent=1 // pred_check
      _
    $region11: #{tpu_custom_call.1} parent=1 // pred_check_branch
      %36 = sbr.rel (0) target = $region13
    $region12: #{tpu_custom_call.1} parent=1 // pred_region
      _
    $region13: #{tpu_custom_call.1} parent=1 // pred_fallthru
      _
    // Predicated region
    $region14: #{tpu_custom_call.1} parent=1 // pred_check
      _
    $region15: #{tpu_custom_call.1} parent=1 // pred_check_branch
      %38 = sbr.rel (0) target = $region17
    $region16: #{tpu_custom_call.1} parent=1 // pred_region
      %39 = dma.done [#allocation3], 256
    $region17: #{tpu_custom_call.1} parent=1 // pred_fallthru
      _
    // Predicated region
    $region18: #{tpu_custom_call.1} parent=1 // pred_check
      _
    $region19: #{tpu_custom_call.1} parent=1 // pred_check_branch
      %41 = sbr.rel (0) target = $region21
    $region20: #{tpu_custom_call.1} parent=1 // pred_region
      %42 = dma.done [#allocation6], 512
    $region21: #{tpu_custom_call.1} parent=1 // pred_fallthru
      _
    %v44 = vld [vmem:[#allocation2] sm:$0xff]
    %v45 = vld [vmem:[#allocation2 + $0x8] sm:$0xff]
    %v46 = vld [vmem:[#allocation5] sm:$0xff]
    %v47 = vld [vmem:[#allocation5 + $0x8] sm:$0xff]
    %v48 = vld [vmem:[#allocation5 + $0x10] sm:$0xff]
    %v49 = vld [vmem:[#allocation5 + $0x18] sm:$0xff]
    %v50 = vpack.c.bf16 %v45, %v44
    %v51 = vunpack.c.l.bf16 %v50
    %v52 = vunpack.c.h.bf16 %v50
    %v53 = vsub.f32 %v44, %v51
    %v54 = vsub.f32 %v45, %v52
    %v55 = vpack.c.bf16 %v54, %v53
    %v56 = vpack.c.bf16 %v47, %v46
    %v57 = vpack.c.bf16 %v49, %v48
    %v58 = vunpack.c.l.bf16 %v56
    %v59 = vunpack.c.h.bf16 %v56
    %v60 = vunpack.c.l.bf16 %v57
    %v61 = vunpack.c.h.bf16 %v57
    %v62 = vsub.f32 %v46, %v58
    %v63 = vsub.f32 %v47, %v59
    %v64 = vsub.f32 %v48, %v60
    %v65 = vsub.f32 %v49, %v61
    %v66 = vpack.c.bf16 %v63, %v62
    %v67 = vpack.c.bf16 %v65, %v64
    %vm68 = vcmask 261120
    %v70 = vsel %vm68, %v50, 0
    %72 = vmatprep.subr.bf16.mxu0 0
    %73 = vmatpush1.bf16.msra.mxu0 %v66
    %74 = vmatprep.subr.bf16.mxu0 0
    %75 = vmatpush1.bf16.msra.mxu0 %v67
    %76 = vmatprep.subr.bf16.mxu0 0
    %77 = vmatpush1.bf16.msra.mxu0 0
    %78 = vmatprep.subr.bf16.mxu0 0
    %79 = vmatpush1.bf16.msra.mxu0 0
    %80 = vmatprep.subr.bf16.mxu0 0
    %81 = vmatpush1.bf16.msra.mxu0 0
    %82 = vmatprep.subr.bf16.mxu0 0
    %83 = vmatpush1.bf16.msra.mxu0 0
    %84 = vmatprep.subr.bf16.mxu0 0
    %85 = vmatpush1.bf16.msra.mxu0 0
    %86 = vmatprep.subr.bf16.mxu0 0
    %87 = vmatpush1.bf16.msra.mxu0 0
    %88 = vmatprep.subr.bf16.mxu0 0
    %89 = vmatpush1.bf16.msra.mxu0 0
    %90 = vmatprep.subr.bf16.mxu0 0
    %91 = vmatpush1.bf16.msra.mxu0 0
    %92 = vmatprep.subr.bf16.mxu0 0
    %93 = vmatpush1.bf16.msra.mxu0 0
    %94 = vmatprep.subr.bf16.mxu0 0
    %95 = vmatpush1.bf16.msra.mxu0 0
    %96 = vmatprep.subr.bf16.mxu0 0
    %97 = vmatpush1.bf16.msra.mxu0 0
    %98 = vmatprep.subr.bf16.mxu0 0
    %99 = vmatpush1.bf16.msra.mxu0 0
    %100 = vmatprep.subr.bf16.mxu0 0
    %101 = vmatpush1.bf16.msra.mxu0 0
    %102 = vmatprep.subr.bf16.mxu0 0
    %103 = vmatpush1.bf16.msra.mxu0 0
    %104 = vmatprep.mubr.bf16.mxu0 0
    %105 = vmatmul.mubr.bf16.gmra.mrb[0].mxu0 %v70
    %v106 = vpop.f32.mrb[0].mxu0
    %v107 = vadd.f32 0.0, %v106
    %v108 = vpop.f32.mrb[0].mxu0
    %v109 = vpop.f32.mrb[0].mxu0
    %v110 = vadd.f32 0.0, %v109
    %v111 = vpop.f32.mrb[0].mxu0
    %112 = vdwg.mxu0
    %113 = vmatprep.subr.bf16.mxu0 0
    %114 = vmatpush1.bf16.msra.mxu0 %v56
    %115 = vmatprep.subr.bf16.mxu0 0
    %116 = vmatpush1.bf16.msra.mxu0 %v57
    %117 = vmatprep.subr.bf16.mxu0 0
    %118 = vmatpush1.bf16.msra.mxu0 0
    %119 = vmatprep.subr.bf16.mxu0 0
    %120 = vmatpush1.bf16.msra.mxu0 0
    %121 = vmatprep.subr.bf16.mxu0 0
    %122 = vmatpush1.bf16.msra.mxu0 0
    %123 = vmatprep.subr.bf16.mxu0 0
    %124 = vmatpush1.bf16.msra.mxu0 0
    %125 = vmatprep.subr.bf16.mxu0 0
    %126 = vmatpush1.bf16.msra.mxu0 0
    %127 = vmatprep.subr.bf16.mxu0 0
    %128 = vmatpush1.bf16.msra.mxu0 0
    %129 = vmatprep.subr.bf16.mxu0 0
    %130 = vmatpush1.bf16.msra.mxu0 0
    %131 = vmatprep.subr.bf16.mxu0 0
    %132 = vmatpush1.bf16.msra.mxu0 0
    %133 = vmatprep.subr.bf16.mxu0 0
    %134 = vmatpush1.bf16.msra.mxu0 0
    %135 = vmatprep.subr.bf16.mxu0 0
    %136 = vmatpush1.bf16.msra.mxu0 0
    %137 = vmatprep.subr.bf16.mxu0 0
    %138 = vmatpush1.bf16.msra.mxu0 0
    %139 = vmatprep.subr.bf16.mxu0 0
    %140 = vmatpush1.bf16.msra.mxu0 0
    %141 = vmatprep.subr.bf16.mxu0 0
    %142 = vmatpush1.bf16.msra.mxu0 0
    %143 = vmatprep.subr.bf16.mxu0 0
    %144 = vmatpush1.bf16.msra.mxu0 0
    %145 = vmatprep.mubr.bf16.mxu0 0
    %146 = vmatmul.mubr.bf16.gmra.mrb[0].mxu0 %v70
    %v147 = vpop.f32.mrb[0].mxu0
    %v148 = vadd.f32 %v107, %v147
    %v149 = vpop.f32.mrb[0].mxu0
    %v150 = vpop.f32.mrb[0].mxu0
    %v151 = vadd.f32 %v110, %v150
    %v152 = vpop.f32.mrb[0].mxu0
    %153 = vdwg.mxu0
    %v155 = vsel %vm68, %v55, 0
    %157 = vmatprep.subr.bf16.mxu0 0
    %158 = vmatpush1.bf16.msra.mxu0 %v56
    %159 = vmatprep.subr.bf16.mxu0 0
    %160 = vmatpush1.bf16.msra.mxu0 %v57
    %161 = vmatprep.subr.bf16.mxu0 0
    %162 = vmatpush1.bf16.msra.mxu0 0
    %163 = vmatprep.subr.bf16.mxu0 0
    %164 = vmatpush1.bf16.msra.mxu0 0
    %165 = vmatprep.subr.bf16.mxu0 0
    %166 = vmatpush1.bf16.msra.mxu0 0
    %167 = vmatprep.subr.bf16.mxu0 0
    %168 = vmatpush1.bf16.msra.mxu0 0
    %169 = vmatprep.subr.bf16.mxu0 0
    %170 = vmatpush1.bf16.msra.mxu0 0
    %171 = vmatprep.subr.bf16.mxu0 0
    %172 = vmatpush1.bf16.msra.mxu0 0
    %173 = vmatprep.subr.bf16.mxu0 0
    %174 = vmatpush1.bf16.msra.mxu0 0
    %175 = vmatprep.subr.bf16.mxu0 0
    %176 = vmatpush1.bf16.msra.mxu0 0
    %177 = vmatprep.subr.bf16.mxu0 0
    %178 = vmatpush1.bf16.msra.mxu0 0
    %179 = vmatprep.subr.bf16.mxu0 0
    %180 = vmatpush1.bf16.msra.mxu0 0
    %181 = vmatprep.subr.bf16.mxu0 0
    %182 = vmatpush1.bf16.msra.mxu0 0
    %183 = vmatprep.subr.bf16.mxu0 0
    %184 = vmatpush1.bf16.msra.mxu0 0
    %185 = vmatprep.subr.bf16.mxu0 0
    %186 = vmatpush1.bf16.msra.mxu0 0
    %187 = vmatprep.subr.bf16.mxu0 0
    %188 = vmatpush1.bf16.msra.mxu0 0
    %189 = vmatprep.mubr.bf16.mxu0 0
    %190 = vmatmul.mubr.bf16.gmra.mrb[0].mxu0 %v155
    %v191 = vpop.f32.mrb[0].mxu0
    %v192 = vadd.f32 0.0, %v191
    %v193 = vpop.f32.mrb[0].mxu0
    %v194 = vpop.f32.mrb[0].mxu0
    %v195 = vadd.f32 0.0, %v194
    %v196 = vpop.f32.mrb[0].mxu0
    %197 = vdwg.mxu0
    %v198 = vadd.f32 %v148, %v192
    %v199 = vadd.f32 %v151, %v195
    %v200 = vld [vmem:[%s2] sm:$0x1]
    %v202 = vlaneseq
    %v203 = vshrl.u32 %v202, 7
    %v204 = vsub.s32 0, %v203
    %v205 = vrot.slane %v200, %v204
    %v207 = vadd.f32 %v198, %v205
    %v208 = vadd.f32 %v199, %v205
    %v209 = vmul.f32 %v207, 30.0
    %v210 = vmul.f32 %v208, 30.0
    %v211 = vand.u32 2147483647, %v209
    %vm212 = vcmp.le.f32.partialorder %v211, 0.7853982
    %vm213 = vcmp.lt.s32.totalorder %v209, 0
    %v214 = vand.u32 %v209, 2139095040
    %v215 = vshrl.u32 %v214, 23
    %v216 = vsub.s32 %v215, 127
    %v217 = vand.u32 2147483647, %v209
    %v218 = vand.u32 %v217, 8388607
    %v219 = vor.u32 %v218, 8388608
    %v220 = vsub.s32 0, %v219
    %v221 = vadd.s32 %v216, 1
    %vm222 = vcmp.gt.s32.totalorder %v221, 0
    %v223 = vsel %vm222, %v221, 0
    %v224 = vshrl.u32 %v223, 5
    %v225 = vand.u32 %v223, 31
    %v226 = vsub.s32 32, %v225
    %v227 = vshrl.u32 683565275, %v226
    %v228 = vshll.u32 683565275, %v225
    %v229 = vshrl.u32 2475754826, %v226
    %v230 = vor.u32 %v228, %v229
    %v231 = vshll.u32 2475754826, %v225
    %v232 = vshrl.u32 2131351028, %v226
    %v233 = vor.u32 %v231, %v232
    %v234 = vshll.u32 2131351028, %v225
    %v235 = vshrl.u32 2102212464, %v226
    %v236 = vor.u32 %v234, %v235
    %v237 = vshll.u32 2102212464, %v225
    %v238 = vshrl.u32 920167782, %v226
    %v239 = vor.u32 %v237, %v238
    %v240 = vshll.u32 920167782, %v225
    %v241 = vshrl.u32 1326507024, %v226
    %v242 = vor.u32 %v240, %v241
    %vm243 = vcmp.lt.s32.totalorder %v224, 1
    %vm244 = vcmp.lt.s32.totalorder %v224, 2
    %vm245 = vcmp.lt.s32.totalorder %v224, 3
    %vm246 = vcmp.lt.s32.totalorder %v224, 4
    %v247 = vsel %vm243, %v227, %v230
    %v248 = vsel %vm246, %v236, 2102212464
    %v249 = vsel %vm245, %v233, %v248
    %v250 = vsel %vm244, %v247, %v249
    %v251 = vsel %vm243, %v230, %v233
    %v252 = vsel %vm246, %v239, 920167782
    %v253 = vsel %vm245, %v236, %v252
    %v254 = vsel %vm244, %v251, %v253
    %v255 = vsel %vm243, %v233, %v236
    %v256 = vsel %vm246, %v242, 1326507024
    %v257 = vsel %vm245, %v239, %v256
    %v258 = vsel %vm244, %v255, %v257
    %v259 = vshll.u32 %v219, 8
    %v260 = vmul.u32.u64.compose %v259, %v258
    %v261 = vextract.low.u32 %v260
    %v262 = vextract.high.u32 %v260
    %v263 = vmul.u32.u64.compose %v259, %v254
    %v264 = vextract.low.u32 %v263
    %v265 = vextract.high.u32 %v263
    %v266 = vmul.u32 %v259, %v250
    %v267 = vadd.s32 %v262, %v264
    %vm268 = vc.u32 %v262, %v264
    %v269 = vadd.s32 %v265, 1
    %v270 = vsel %vm268, %v269, %v265
    %v271 = vadd.s32 %v266, %v270
    %v272 = vadd.s32 %v271, 536870912
    %v273 = vshrl.u32 %v272, 30
    %v274 = vshll.u32 %v273, 30
    %v275 = vsub.s32 %v271, %v274
    %vm276 = vcmp.lt.s32.totalorder %v275, 0
    %v277 = vsub.s32 0, %v275
    %v278 = vsel %vm276, %v277, %v275
    %v279 = vclz %v278
    %v280 = vsub.s32 %v279, 2
    %vm281 = vcmp.gt.s32.totalorder 0, %v280
    %v282 = vsel %vm281, 0, %v280
    %v283 = vsub.s32 32, %v282
    %v284 = vshll.u32 %v275, %v282
    %v285 = vshrl.u32 %v267, %v283
    %v286 = vor.u32 %v284, %v285
    %v287 = vsub.s32 4294967266, %v282
    %v288 = vadd.s32 %v287, 127
    %v289 = vshll.u32 %v288, 23
    %v290 = vor.u32 4788187, %v289
    %v291 = vand.u32 2147483647, %v290
    %v293 = vcvt.s32.f32 %v286
    %v294 = vmul.f32 %v293, %v291
    %v295 = vxor.u32 %v294, 2147483648
    %v296 = vsel %vm213, %v295, %v294
    %v297 = vsub.s32 4, %v273
    %v298 = vsel %vm213, %v297, %v273
    %v299 = vsel %vm212, %v209, %v296
    %v300 = vsel %vm212, 0, %v298
    %v301 = vcosq.f32.pop %v299
    %v302 = vsinq.f32.pop %v299
    %vm303 = vweird.f32 %v209
    %v304 = vadd.s32 %v300, 3
    %v305 = vand.u32 %v304, 3
    %vm306 = vcmp.lt.s32.totalorder %v305, 2
    %vm307 = vcmp.eq.s32.totalorder %v305, 0
    %v308 = vxor.u32 %v302, 2147483648
    %v309 = vsel %vm307, %v301, %v308
    %vm310 = vcmp.eq.s32.totalorder %v305, 2
    %v311 = vxor.u32 %v301, 2147483648
    %v312 = vsel %vm310, %v311, %v302
    %v313 = vsel %vm306, %v309, %v312
    %v314 = vsel %vm303, nan, %v313
    %v315 = vand.u32 2147483647, %v210
    %vm316 = vcmp.le.f32.partialorder %v315, 0.7853982
    %vm317 = vcmp.lt.s32.totalorder %v210, 0
    %v318 = vand.u32 %v210, 2139095040
    %v319 = vshrl.u32 %v318, 23
    %v320 = vsub.s32 %v319, 127
    %v321 = vand.u32 2147483647, %v210
    %v322 = vand.u32 %v321, 8388607
    %v323 = vor.u32 %v322, 8388608
    %v324 = vsub.s32 0, %v323
    %v325 = vadd.s32 %v320, 1
    %vm326 = vcmp.gt.s32.totalorder %v325, 0
    %v327 = vsel %vm326, %v325, 0
    %v328 = vshrl.u32 %v327, 5
    %v329 = vand.u32 %v327, 31
    %v330 = vsub.s32 32, %v329
    %v331 = vshrl.u32 683565275, %v330
    %v332 = vshll.u32 683565275, %v329
    %v333 = vshrl.u32 2475754826, %v330
    %v334 = vor.u32 %v332, %v333
    %v335 = vshll.u32 2475754826, %v329
    %v336 = vshrl.u32 2131351028, %v330
    %v337 = vor.u32 %v335, %v336
    %v338 = vshll.u32 2131351028, %v329
    %v339 = vshrl.u32 2102212464, %v330
    %v340 = vor.u32 %v338, %v339
    %v341 = vshll.u32 2102212464, %v329
    %v342 = vshrl.u32 920167782, %v330
    %v343 = vor.u32 %v341, %v342
    %v344 = vshll.u32 920167782, %v329
    %v345 = vshrl.u32 1326507024, %v330
    %v346 = vor.u32 %v344, %v345
    %vm347 = vcmp.lt.s32.totalorder %v328, 1
    %vm348 = vcmp.lt.s32.totalorder %v328, 2
    %vm349 = vcmp.lt.s32.totalorder %v328, 3
    %vm350 = vcmp.lt.s32.totalorder %v328, 4
    %v351 = vsel %vm347, %v331, %v334
    %v352 = vsel %vm350, %v340, 2102212464
    %v353 = vsel %vm349, %v337, %v352
    %v354 = vsel %vm348, %v351, %v353
    %v355 = vsel %vm347, %v334, %v337
    %v356 = vsel %vm350, %v343, 920167782
    %v357 = vsel %vm349, %v340, %v356
    %v358 = vsel %vm348, %v355, %v357
    %v359 = vsel %vm347, %v337, %v340
    %v360 = vsel %vm350, %v346, 1326507024
    %v361 = vsel %vm349, %v343, %v360
    %v362 = vsel %vm348, %v359, %v361
    %v363 = vshll.u32 %v323, 8
    %v364 = vmul.u32.u64.compose %v363, %v362
    %v365 = vextract.low.u32 %v364
    %v366 = vextract.high.u32 %v364
    %v367 = vmul.u32.u64.compose %v363, %v358
    %v368 = vextract.low.u32 %v367
    %v369 = vextract.high.u32 %v367
    %v370 = vmul.u32 %v363, %v354
    %v371 = vadd.s32 %v366, %v368
    %vm372 = vc.u32 %v366, %v368
    %v373 = vadd.s32 %v369, 1
    %v374 = vsel %vm372, %v373, %v369
    %v375 = vadd.s32 %v370, %v374
    %v376 = vadd.s32 %v375, 536870912
    %v377 = vshrl.u32 %v376, 30
    %v378 = vshll.u32 %v377, 30
    %v379 = vsub.s32 %v375, %v378
    %vm380 = vcmp.lt.s32.totalorder %v379, 0
    %v381 = vsub.s32 0, %v379
    %v382 = vsel %vm380, %v381, %v379
    %v383 = vclz %v382
    %v384 = vsub.s32 %v383, 2
    %vm385 = vcmp.gt.s32.totalorder 0, %v384
    %v386 = vsel %vm385, 0, %v384
    %v387 = vsub.s32 32, %v386
    %v388 = vshll.u32 %v379, %v386
    %v389 = vshrl.u32 %v371, %v387
    %v390 = vor.u32 %v388, %v389
    %v391 = vsub.s32 4294967266, %v386
    %v392 = vadd.s32 %v391, 127
    %v393 = vshll.u32 %v392, 23
    %v394 = vor.u32 4788187, %v393
    %v395 = vand.u32 2147483647, %v394
    %v397 = vcvt.s32.f32 %v390
    %v398 = vmul.f32 %v397, %v395
    %v399 = vxor.u32 %v398, 2147483648
    %v400 = vsel %vm317, %v399, %v398
    %v401 = vsub.s32 4, %v377
    %v402 = vsel %vm317, %v401, %v377
    %v403 = vsel %vm316, %v210, %v400
    %v404 = vsel %vm316, 0, %v402
    %v405 = vcosq.f32.pop %v403
    %v406 = vsinq.f32.pop %v403
    %vm407 = vweird.f32 %v210
    %v408 = vadd.s32 %v404, 3
    %v409 = vand.u32 %v408, 3
    %vm410 = vcmp.lt.s32.totalorder %v409, 2
    %vm411 = vcmp.eq.s32.totalorder %v409, 0
    %v412 = vxor.u32 %v406, 2147483648
    %v413 = vsel %vm411, %v405, %v412
    %vm414 = vcmp.eq.s32.totalorder %v409, 2
    %v415 = vxor.u32 %v405, 2147483648
    %v416 = vsel %vm414, %v415, %v406
    %v417 = vsel %vm410, %v413, %v416
    %v418 = vsel %vm407, nan, %v417
    %419 = vst [vmem:[#allocation7] sm:$0xff] %v314
    %420 = vst [vmem:[#allocation7 + $0x8] sm:$0xff] %v418
    // Predicated region
    $region22: #{tpu_custom_call.1} parent=1 // pred_check
      _
    $region23: #{tpu_custom_call.1} parent=1 // pred_check_branch
      %422 = sbr.rel (0) target = $region25
    $region24: #{tpu_custom_call.1} parent=1 // pred_region
      %s424 = ssub.s32 256, 256
      %425 = vsyncadd [#allocation4], %s424
      %s426 = sshll.u32 [#allocation7], 4
      %s427 = int_to_ptr.vmem [resolvable:$true] %s426
      %432 = dma.vmem_to_hbm [thread:$0]  %s427, 256, %s3, [#allocation4], 128, 128, 8
    $region25: #{tpu_custom_call.1} parent=1 // pred_fallthru
      _
    // Predicated region
    $region26: #{tpu_custom_call.1} parent=1 // pred_check
      _
    $region27: #{tpu_custom_call.1} parent=1 // pred_check_branch
      %434 = sbr.rel (0) target = $region29
    $region28: #{tpu_custom_call.1} parent=1 // pred_region
      %435 = dma.done [#allocation4], 256
    $region29: #{tpu_custom_call.1} parent=1 // pred_fallthru
      _
    %436 = vsyncpa [#allocation3], 1
    %437 = vsyncpa [#allocation6], 1
    %438 = vsyncpa [#allocation4], 1

</llo_original>
